<compile_context>
chip_gen: v7x
topology: tpu7x:2x2x1
jax: 0.10.0
libtpu: 0.0.40
codegen_flags: <defaults>
</compile_context>

<pallas_src>
from functools import partial

import jax
import jax.numpy as jnp
from jax import lax
from jax.experimental import pallas as pl
from jax.experimental.pallas import tpu as pltpu


# ----------------------------------------------------------------------------
# Pallas kernel: fused batched gather + centring for one (batch, group-tile),
# accumulated over K tiles of points.
# ----------------------------------------------------------------------------
def _group_center_kernel(idx_ref, pts_ref, ctr_ref, o_ref, acc_ref, *,
                         tp, s, tk, precision):
    """idx_ref: (1, 1, 1, tp*S) int32  flattened ball-query indices of this tile
    pts_ref:   (1, Cin, TK)            point/feature columns of this K tile
    ctr_ref:   (1, 1, Cin, tp)         per-group centre columns (zero rows where
                                       no centring must be applied)
    o_ref:     (1, 1, Cin, tp*S)       lane-dense grouped & centred output block
    acc_ref:   (Cin, tp*S) f32         accumulator scratch (persists over K axis)
    """
    k = pl.program_id(2)
    tps = tp * s

    @pl.when(k == 0)
    def _():
        acc_ref[...] = jnp.zeros_like(acc_ref)

    pts = pts_ref[0]                                        # (Cin, TK)
    idx_row = idx_ref[0, 0]                                 # (1, tp*S) global ids
    # Global ids of the point columns held in this K tile.
    row_ids = lax.broadcasted_iota(jnp.int32, (tk, tps), 0) + k * tk
    # One-hot gather selector for ALL tp groups at once -> one wide MXU matmul
    # with tp*S result columns (instead of tp narrow S-column matmuls).
    sel = (row_ids == idx_row).astype(pts.dtype)            # (TK, tp*S)
    acc_ref[...] += jnp.dot(pts, sel,
                            preferred_element_type=jnp.float32,
                            precision=precision)

    @pl.when(k == pl.num_programs(2) - 1)
    def _():
        # Centre subtraction AFTER the gather matmul: broadcast each group's
        # centre over its S columns with a tiny (Cin, tp) @ (tp, tp*S) one-hot
        # matmul (selector build is O(tp*tp*S), not O(N*tp*S)).
        ctr = ctr_ref[0, 0]                                 # (Cin, tp)
        col = lax.broadcasted_iota(jnp.int32, (tp, tps), 1)
        row_start = lax.broadcasted_iota(jnp.int32, (tp, tps), 0) * s
        bsel = ((col >= row_start) & (col < row_start + s)).astype(ctr.dtype)
        ctr_b = jnp.dot(ctr, bsel,
                        preferred_element_type=jnp.float32,
                        precision=precision)                # (Cin, tp*S)
        o_ref[0, 0] = (acc_ref[...] - ctr_b).astype(o_ref.dtype)


def _pallas_group_and_center(idx_flat, pts, ctr, *, tp, s, tk, out_dtype,
                             precision):
    """idx_flat: (B, T, 1, tp*S) int32, pts: (B, Cin, Npad), ctr: (B, T, Cin, tp)
    -> (B, T, Cin, tp*S) lane-dense grouped & centred output."""
    B, T, _, tps = idx_flat.shape
    _, cin, n_pad = pts.shape
    nk = n_pad // tk
    dsz = jnp.dtype(pts.dtype).itemsize
    osz = jnp.dtype(out_dtype).itemsize

    # Explicit VMEM budget: blocks x buffer counts + selector temporaries.
    needed = (2 * cin * tk * dsz            # pts block (double-buffered over K)
              + 2 * tps * 4                 # idx block
              + 2 * cin * tp * dsz          # centre block
              + 2 * cin * tps * osz         # output block
              + cin * tps * 4               # f32 accumulator scratch
              + tk * tps * (dsz + 4)        # gather selector + row-id iota temps
              + tp * tps * (dsz + 8))       # centre-broadcast selector temps
    try:
        cap = pltpu.get_tpu_info().vmem_capacity_bytes
    except Exception:
        cap = 64 * 1024 * 1024              # conservative (v7x per-TC VMEM)
    vmem_limit = int(min(max(2 * needed + (8 << 20), 32 << 20), int(0.75 * cap)))

    # All BlockSpecs keep the last two block dims equal to the full array dims
    # (or a 128 multiple for the streamed pts axis), so tp/Cin/S need no (8,128)
    # alignment and no second-minor partial blocks ever occur.
    return pl.pallas_call(
        partial(_group_center_kernel, tp=tp, s=s, tk=tk, precision=precision),
        out_shape=jax.ShapeDtypeStruct((B, T, cin, tps), out_dtype),
        grid=(B, T, nk),
        in_specs=[
            pl.BlockSpec((1, 1, 1, tps), lambda b, t, k: (b, t, 0, 0)),
            pl.BlockSpec((1, cin, tk), lambda b, t, k: (b, 0, k)),
            pl.BlockSpec((1, 1, cin, tp), lambda b, t, k: (b, t, 0, 0)),
        ],
        out_specs=pl.BlockSpec((1, 1, cin, tps), lambda b, t, k: (b, t, 0, 0)),
        scratch_shapes=[pltpu.VMEM((cin, tps), jnp.float32)],
        compiler_params=pltpu.CompilerParams(
            dimension_semantics=("parallel", "parallel", "arbitrary"),
            vmem_limit_bytes=vmem_limit,
        ),
    )(idx_flat, pts, ctr)


# ----------------------------------------------------------------------------
# Plain-JAX glue: scatter-free ball query (matmul d^2 + top_k on a rank key)
# ----------------------------------------------------------------------------
def ball_query(radius, nsample, xyz, new_xyz):
    """xyz: (B, N, 3), new_xyz: (B, P, 3) -> (B, P, nsample) int32.
    First `nsample` in-ball points in index order, padded with the first hit.
    Empty balls fall back to index 0 (matches the zero-initialised CUDA buffer).
    """
    # TODO(synk): fully fusing ball query (d^2 matmul + on-chip rank/selection)
    # into the Pallas grouping kernel would remove the remaining (B,P,N) HBM
    # round-trips; kept in XLA (scatter-free) here.
    B, N, _ = xyz.shape
    P = new_xyz.shape[1]
    # d^2 = |c|^2 + |x|^2 - 2 c.x   (MXU matmul, no (B, P, N, 3) intermediate)
    x2 = jnp.sum(xyz * xyz, axis=-1)                                     # (B, N)
    c2 = jnp.sum(new_xyz * new_xyz, axis=-1)                             # (B, P)
    cx = jnp.einsum('bpd,bnd->bpn', new_xyz, xyz,
                    precision=lax.Precision.HIGHEST)                     # (B, P, N)
    d2 = c2[:, :, None] + x2[:, None, :] - 2.0 * cx
    iota_n = jnp.arange(N, dtype=jnp.int32)
    keys = jnp.where(d2 < radius * radius, iota_n[None, None, :], N)     # rank key
    k_eff = min(nsample, N)
    neg_top, _ = lax.top_k(-keys, k_eff)       # k smallest keys (no XLA scatter)
    idx = -neg_top                             # ascending; == N where no hit
    first = idx[..., :1]
    first = jnp.where(first < N, first, 0)     # empty ball -> index 0
    idx = jnp.where(idx < N, idx, first)       # pad missing slots with first hit
    if k_eff < nsample:
        idx = jnp.concatenate(
            [idx, jnp.broadcast_to(first, (B, P, nsample - k_eff))], axis=-1)
    return idx.astype(jnp.int32)


# ----------------------------------------------------------------------------
# Module
# ----------------------------------------------------------------------------
class PointNet2GroupingLayerPallas:
    def __init__(self, radius, num_samples, use_xyz_feature=True,
                 use_random_ball_query=False, lane_target=256, point_tile=2048,
                 compute_dtype=jnp.float32, out_dtype=None):
        self.radius = radius
        self.num_samples = num_samples
        self.use_xyz_feature = use_xyz_feature
        # TODO(synk): use_random_ball_query=True (randomized CUDA ball query) is
        # not implemented; the deterministic first-nsample query is used instead.
        self.use_random_ball_query = use_random_ball_query
        # Groups per tile are chosen so tp * nsample >= lane_target matmul result
        # columns (256 fills the v6e/v7x MXU result width; use 128 on v5e).
        self.lane_target = lane_target
        # Points per K step: bounds the resident pts block and the (TK, tp*S)
        # selector (rounded to a multiple of 128 when N > point_tile).
        self.point_tile = point_tile
        # float32 -> exact gather (precision=HIGHEST); bfloat16 -> native MXU rate.
        self.compute_dtype = compute_dtype
        self.out_dtype = out_dtype            # None -> match input dtype

    def __call__(self, xyz, new_xyz, features=None):
        """xyz: (B, N, 3), new_xyz: (B, P, 3), features: (B, C, N) or None.
        radius is None  -> (B, [3+]C, N)          (group-all path)
        radius is float -> (B, P, 3[+C], nsample) (ball-query grouping)"""
        if self.radius is None:
            grouped_xyz = jnp.transpose(xyz, (0, 2, 1))                  # (B, 3, N)
            if features is not None:
                if self.use_xyz_feature:
                    return jnp.concatenate([grouped_xyz, features], axis=1)
                return features
            return grouped_xyz

        B, N, _ = xyz.shape
        P = new_xyz.shape[1]
        S = self.num_samples
        cdt = jnp.dtype(self.compute_dtype)
        out_dtype = self.out_dtype
        if out_dtype is None:
            out_dtype = features.dtype if features is not None else xyz.dtype
        precision = (lax.Precision.HIGHEST
                     if cdt == jnp.dtype(jnp.float32) else None)

        idx = ball_query(self.radius, S, xyz, new_xyz)                   # (B, P, S)

        xyz_t = jnp.transpose(xyz, (0, 2, 1)).astype(cdt)                # (B, 3, N)
        new_t = jnp.transpose(new_xyz, (0, 2, 1)).astype(cdt)            # (B, 3, P)
        if features is not None:
            feats = features.astype(cdt)
            C = feats.shape[1]
            if self.use_xyz_feature:
                pts = jnp.concatenate([xyz_t, feats], axis=1)            # (B, 3+C, N)
                ctr = jnp.concatenate(
                    [new_t, jnp.zeros((B, C, P), cdt)], axis=1)          # (B, 3+C, P)
            else:
                pts = feats                                              # (B, C, N)
                ctr = jnp.zeros((B, C, P), cdt)                          # no centring
        else:
            assert self.use_xyz_feature, \
                "Must have at least one feature or set use_xyz_feature = True"
            pts = xyz_t
            ctr = new_t
        Cin = pts.shape[1]

        # ---- tiling --------------------------------------------------------
        tp = min(P, max(1, -(-self.lane_target // S)))       # groups per tile
        p_pad = -(-P // tp) * tp
        T = p_pad // tp
        if N <= self.point_tile:
            tk, n_pad = N, N
        else:
            tk = max(128, (self.point_tile // 128) * 128)     # keep 128-aligned
            n_pad = -(-N // tk) * tk

        if p_pad != P:   # padded groups gather point 0 / zero centre; sliced off
            idx = jnp.pad(idx, ((0, 0), (0, p_pad - P), (0, 0)))
            ctr = jnp.pad(ctr, ((0, 0), (0, 0), (0, p_pad - P)))
        if n_pad != N:   # zero point columns never match an index -> contribute 0
            pts = jnp.pad(pts, ((0, 0), (0, 0), (0, n_pad - N)))

        idx_flat = idx.reshape(B, T, 1, tp * S)                          # lane-flat
        ctr_t = jnp.transpose(ctr.reshape(B, Cin, T, tp), (0, 2, 1, 3))  # (B,T,Cin,tp)

        out_tiled = _pallas_group_and_center(
            idx_flat, pts, ctr_t, tp=tp, s=S, tk=tk,
            out_dtype=out_dtype, precision=precision)                    # (B,T,Cin,tp*S)

        # Kernel output is lane-dense; rearrange to the module's (B, P, 3+C, S)
        # layout outside the kernel (consumers wanting (B, Cin, P*S) can use
        # out_tiled directly and skip this transpose).
        out = out_tiled.reshape(B, T, Cin, tp, S)
        out = jnp.transpose(out, (0, 1, 3, 2, 4)).reshape(B, p_pad, Cin, S)
        return out[:, :P]


# ----------------------------------------------------------------------------
# Pure-JAX reference (for the self-check in __main__)
# ----------------------------------------------------------------------------
def _reference_grouping(xyz, new_xyz, features, idx, use_xyz_feature):
    xyz_t = jnp.transpose(xyz, (0, 2, 1))
    g_xyz = jax.vmap(lambda f, i: f[:, i])(xyz_t, idx)                   # (B,3,P,S)
    g_xyz = g_xyz - jnp.transpose(new_xyz, (0, 2, 1))[..., None]
    if features is not None:
        g_feat = jax.vmap(lambda f, i: f[:, i])(features, idx)           # (B,C,P,S)
        nf = jnp.concatenate([g_xyz, g_feat], axis=1) if use_xyz_feature else g_feat
    else:
        nf = g_xyz
    return jnp.transpose(nf, (0, 2, 1, 3))                               # (B,P,Cin,S)


# ----------------------------------------------------------------------------
if __name__ == "__main__":
    key = jax.random.PRNGKey(0)
    k1, k2, k3, k4 = jax.random.split(key, 4)

    # --- test 1: small single-tile problem, exact f32 path ------------------
    B, N, C = 2, 16, 4
    npoint, nsample, radius = 4, 8, 0.4
    xyz = jax.random.uniform(k1, (B, N, 3), jnp.float32)
    features = jax.random.normal(k2, (B, C, N), jnp.float32)
    new_xyz = xyz[:, :npoint, :]       # centroids (would come from FPS upstream)

    layer = PointNet2GroupingLayerPallas(radius=radius, num_samples=nsample,
                                         use_xyz_feature=True)
    out = layer(xyz, new_xyz, features)
    jax.block_until_ready(out)
    assert out.shape == (B, npoint, 3 + C, nsample), out.shape

    idx = ball_query(radius, nsample, xyz, new_xyz)
    ref = _reference_grouping(xyz, new_xyz, features, idx, use_xyz_feature=True)
    assert jnp.allclose(out, ref, atol=1e-5, rtol=1e-5)

    # bf16 fast path (native-rate MXU gather), relaxed tolerance.
    layer_bf16 = PointNet2GroupingLayerPallas(
        radius=radius, num_samples=nsample, use_xyz_feature=True,
        compute_dtype=jnp.bfloat16)
    out_bf16 = layer_bf16(xyz, new_xyz, features)
    jax.block_until_ready(out_bf16)
    assert jnp.allclose(out_bf16.astype(jnp.float32), ref, atol=5e-2, rtol=5e-2)

    # --- test 2: multi group-tile + tiled-K accumulation path ----------------
    B2, N2, C2 = 2, 300, 5
    P2, S2, r2 = 20, 8, 0.35
    xyz2 = jax.random.uniform(k3, (B2, N2, 3), jnp.float32)
    feat2 = jax.random.normal(k4, (B2, C2, N2), jnp.float32)
    new_xyz2 = xyz2[:, :P2, :]
    layer2 = PointNet2GroupingLayerPallas(radius=r2, num_samples=S2,
                                          use_xyz_feature=True,
                                          lane_target=16, point_tile=128)
    out2 = layer2(xyz2, new_xyz2, feat2)
    jax.block_until_ready(out2)
    assert out2.shape == (B2, P2, 3 + C2, S2), out2.shape
    idx2 = ball_query(r2, S2, xyz2, new_xyz2)
    ref2 = _reference_grouping(xyz2, new_xyz2, feat2, idx2, use_xyz_feature=True)
    assert jnp.allclose(out2, ref2, atol=1e-5, rtol=1e-5)

    # --- group-all path (radius=None): plain concat/transpose, no kernel ----
    layer_all = PointNet2GroupingLayerPallas(radius=None, num_samples=None)
    out_all = layer_all(xyz, new_xyz, features)
    jax.block_until_ready(out_all)
    assert out_all.shape == (B, 3 + C, N), out_all.shape

    print("KERNEL_OK")
</pallas_src>

<mosaic_0001>
module attributes {stable_mosaic.version = 11 : i64} {
  func.func @_group_center_kernel(%arg0: i32, %arg1: i32, %arg2: i32, %arg3: memref<1x1x1x32xi32, #tpu.memory_space<vmem>>, %arg4: memref<1x7x16xf32, #tpu.memory_space<vmem>>, %arg5: memref<1x1x7x4xf32, #tpu.memory_space<vmem>>, %arg6: memref<1x1x7x32xf32, #tpu.memory_space<vmem>>, %arg7: memref<7x32xf32, #tpu.memory_space<vmem>>) attributes {dimension_semantics = [#tpu.dimension_semantics<parallel>, #tpu.dimension_semantics<parallel>, #tpu.dimension_semantics<arbitrary>], iteration_bounds = array<i64: 2, 1, 1>, scalar_prefetch = 0 : i64, scratch_operands = 1 : i64, tpu.core_type = #tpu.core_type<tc>, window_params = [{transform_indices = @transform_0, window_bounds = array<i64: 1, 1, 1, 32>}, {transform_indices = @transform_1, window_bounds = array<i64: 1, 7, 16>}, {transform_indices = @transform_2, window_bounds = array<i64: 1, 1, 7, 4>}, {transform_indices = @transform_3, window_bounds = array<i64: 1, 1, 7, 32>}]} {
    %c0_i32 = arith.constant 0 : i32
    %0 = arith.cmpi eq, %arg2, %c0_i32 : i32
    %1 = arith.extui %0 : i1 to i32
    %c0_i32_0 = arith.constant 0 : i32
    %2 = arith.cmpi ne, %1, %c0_i32_0 : i32
    scf.if %2 {
      %cst_13 = arith.constant 0.000000e+00 : f32
      %22 = vector.broadcast %cst_13 : f32 to vector<7x32xf32>
      %c0_14 = arith.constant 0 : index
      %c0_15 = arith.constant 0 : index
      %23 = vector.load %arg7[%c0_14, %c0_15] : memref<7x32xf32, #tpu.memory_space<vmem>>, vector<7x32xf32>
      tpu.vector_store %arg7[%c0_14, %c0_15], %22 {strides = array<i32>} : memref<7x32xf32, #tpu.memory_space<vmem>>, vector<7x32xf32>,
    } else {
    }
    %c0 = arith.constant 0 : index
    %c0_1 = arith.constant 0 : index
    %c0_2 = arith.constant 0 : index
    %3 = vector.load %arg4[%c0, %c0_1, %c0_2] : memref<1x7x16xf32, #tpu.memory_space<vmem>>, vector<1x7x16xf32>
    %4 = vector.shape_cast %3 : vector<1x7x16xf32> to vector<7x16xf32>
    %c0_3 = arith.constant 0 : index
    %c0_4 = arith.constant 0 : index
    %c0_5 = arith.constant 0 : index
    %c0_6 = arith.constant 0 : index
    %5 = vector.load %arg3[%c0_3, %c0_4, %c0_5, %c0_6] : memref<1x1x1x32xi32, #tpu.memory_space<vmem>>, vector<1x1x1x32xi32>
    %6 = vector.shape_cast %5 : vector<1x1x1x32xi32> to vector<1x32xi32>
    %7 = tpu.iota {dimensions = array<i32: 0>} : vector<16x32xi32>
    %c16_i32 = arith.constant 16 : i32
    %8 = arith.muli %arg2, %c16_i32 : i32
    %9 = vector.broadcast %8 : i32 to vector<16x32xi32>
    %10 = arith.addi %7, %9 : vector<16x32xi32>
    %11 = vector.broadcast %6 : vector<1x32xi32> to vector<16x32xi32>
    %12 = arith.cmpi eq, %10, %11 : vector<16x32xi32>
    %13 = arith.extui %12 : vector<16x32xi1> to vector<16x32xi32>
    %14 = arith.sitofp %13 : vector<16x32xi32> to vector<16x32xf32>
    %c0_7 = arith.constant 0 : index
    %c0_8 = arith.constant 0 : index
    %15 = vector.load %arg7[%c0_7, %c0_8] : memref<7x32xf32, #tpu.memory_space<vmem>>, vector<7x32xf32>
    %cst = arith.constant dense<0.000000e+00> : vector<7x32xf32>
    %16 = tpu.matmul %4, %14, %cst {dimension_numbers = #tpu.dot_dimension_numbers<[1], [0], [0], [1], [0, 0, 1, 1], [], []>, precision = #tpu.contract_precision<fp32>} : vector<7x16xf32>, vector<16x32xf32>, vector<7x32xf32> -> vector<7x32xf32>
    %17 = arith.addf %15, %16 : vector<7x32xf32>
    %c0_9 = arith.constant 0 : index
    %c0_10 = arith.constant 0 : index
    %18 = vector.load %arg7[%c0_9, %c0_10] : memref<7x32xf32, #tpu.memory_space<vmem>>, vector<7x32xf32>
    tpu.vector_store %arg7[%c0_9, %c0_10], %17 {strides = array<i32>} : memref<7x32xf32, #tpu.memory_space<vmem>>, vector<7x32xf32>,
    %c0_i32_11 = arith.constant 0 : i32
    %19 = arith.cmpi eq, %arg2, %c0_i32_11 : i32
    %20 = arith.extui %19 : i1 to i32
    %c0_i32_12 = arith.constant 0 : i32
    %21 = arith.cmpi ne, %20, %c0_i32_12 : i32
    scf.if %21 {
      %c0_13 = arith.constant 0 : index
      %c0_14 = arith.constant 0 : index
      %c0_15 = arith.constant 0 : index
      %c0_16 = arith.constant 0 : index
      %22 = vector.load %arg5[%c0_13, %c0_14, %c0_15, %c0_16] : memref<1x1x7x4xf32, #tpu.memory_space<vmem>>, vector<1x1x7x4xf32>
      %23 = vector.shape_cast %22 : vector<1x1x7x4xf32> to vector<7x4xf32>
      %24 = tpu.iota {dimensions = array<i32: 1>} : vector<4x32xi32>
      %25 = tpu.iota {dimensions = array<i32: 0>} : vector<4x32xi32>
      %c8_i32 = arith.constant 8 : i32
      %26 = vector.broadcast %c8_i32 : i32 to vector<4x32xi32>
      %27 = arith.muli %25, %26 : vector<4x32xi32>
      %28 = arith.cmpi sge, %24, %27 : vector<4x32xi32>
      %c8_i32_17 = arith.constant 8 : i32
      %29 = vector.broadcast %c8_i32_17 : i32 to vector<4x32xi32>
      %30 = arith.addi %27, %29 : vector<4x32xi32>
      %31 = arith.cmpi slt, %24, %30 : vector<4x32xi32>
      %32 = arith.andi %28, %31 : vector<4x32xi1>
      %33 = arith.extui %32 : vector<4x32xi1> to vector<4x32xi32>
      %34 = arith.sitofp %33 : vector<4x32xi32> to vector<4x32xf32>
      %cst_18 = arith.constant dense<0.000000e+00> : vector<7x32xf32>
      %35 = tpu.matmul %23, %34, %cst_18 {dimension_numbers = #tpu.dot_dimension_numbers<[1], [0], [0], [1], [0, 0, 1, 1], [], []>, precision = #tpu.contract_precision<fp32>} : vector<7x4xf32>, vector<4x32xf32>, vector<7x32xf32> -> vector<7x32xf32>
      %c0_19 = arith.constant 0 : index
      %c0_20 = arith.constant 0 : index
      %36 = vector.load %arg7[%c0_19, %c0_20] : memref<7x32xf32, #tpu.memory_space<vmem>>, vector<7x32xf32>
      %37 = arith.subf %36, %35 : vector<7x32xf32>
      %c0_21 = arith.constant 0 : index
      %c0_22 = arith.constant 0 : index
      %c0_23 = arith.constant 0 : index
      %c0_24 = arith.constant 0 : index
      %38 = vector.load %arg6[%c0_21, %c0_22, %c0_23, %c0_24] : memref<1x1x7x32xf32, #tpu.memory_space<vmem>>, vector<1x1x7x32xf32>
      %39 = vector.shape_cast %38 : vector<1x1x7x32xf32> to vector<7x32xf32>
      %40 = vector.shape_cast %37 : vector<7x32xf32> to vector<1x1x7x32xf32>
      tpu.vector_store %arg6[%c0_21, %c0_22, %c0_23, %c0_24], %40 {strides = array<i32>} : memref<1x1x7x32xf32, #tpu.memory_space<vmem>>, vector<1x1x7x32xf32>,
    } else {
    }
    return
  }
  func.func @transform_0(%arg0: i32, %arg1: i32, %arg2: i32) -> (i32, i32, i32, i32) {
    %c0_i32 = arith.constant 0 : i32
    %c0_i32_0 = arith.constant 0 : i32
    %c0_i32_1 = arith.constant 0 : i32
    return %arg0, %arg1, %c0_i32, %c0_i32_0 : i32, i32, i32, i32
  }
  func.func @transform_1(%arg0: i32, %arg1: i32, %arg2: i32) -> (i32, i32, i32) {
    %c0_i32 = arith.constant 0 : i32
    %c0_i32_0 = arith.constant 0 : i32
    return %arg0, %c0_i32, %arg2 : i32, i32, i32
  }
  func.func @transform_2(%arg0: i32, %arg1: i32, %arg2: i32) -> (i32, i32, i32, i32) {
    %c0_i32 = arith.constant 0 : i32
    %c0_i32_0 = arith.constant 0 : i32
    %c0_i32_1 = arith.constant 0 : i32
    return %arg0, %arg1, %c0_i32, %c0_i32_0 : i32, i32, i32, i32
  }
  func.func @transform_3(%arg0: i32, %arg1: i32, %arg2: i32) -> (i32, i32, i32, i32) {
    %c0_i32 = arith.constant 0 : i32
    %c0_i32_0 = arith.constant 0 : i32
    %c0_i32_1 = arith.constant 0 : i32
    return %arg0, %arg1, %c0_i32, %c0_i32_0 : i32, i32, i32, i32
  }
}

</mosaic_0001>

<llo_original>
// kernel: tpu_custom_call.1
$region0: #{tpu_custom_call.1}
  #allocation0 [shape = 'u32[]', space=smem, size = 0x4, offset = 0x4, fixed_abs, tag = 'smem constant byte address 0x4 - core index']
  #allocation1 [shape = 'u32[144,128]{1,0:T(1,128)}', space=vmem, size = 0x12000, scoped, tag = 'internal scratch']
  #allocation2 [shape = 'f32[7,32]{1,0:T(8,128)}', space=vmem, size = 0x1000, scoped, tag = 'scratch operand']
  %s0 = inlined_call_operand.vmem [shape: s32[2,1,1,32], index: 0, kind: input, shape index: {}]
  %s1 = inlined_call_operand.vmem [shape: f32[2,7,16], index: 1, kind: input, shape index: {}]
  %s2 = inlined_call_operand.vmem [shape: f32[2,1,7,4], index: 2, kind: input, shape index: {}]
  %s3 = inlined_call_operand.vmem [shape: f32[2,1,7,32], index: 3, kind: output, shape index: {}]
  %s4 = sld [smem:[#allocation0]]
  $region53: #{tpu_custom_call.1} parent=0
    _
  %s6 = ssub.s32 1, %s4
  %s7 = scalar_select 0, %s6, %s4
  loop: start=0, step=1, limit=4
  $region2: #{tpu_custom_call.1} parent=0 // loop_pre_header
    _
  $region3: #{tpu_custom_call.1} parent=0 // loop_header
    %s9 = sphi 0, %s13
    %p10 = scmp.ge.s32.totalorder %s9, 4
    %s16 = sphi 0, %s35
    %s17 = sphi 0, %s31
    %s18 = sphi 0, %s27
    %s19 = sphi 0, %s16
    %s20 = sphi 0, %s17
    %s21 = sphi 0, %s18
    %s22 = sphi 0, %s19
    %s23 = sphi 0, %s20
    %s24 = sphi 0, %s21
    %s40 = sphi 0, %s42
    %s43 = sphi 0, %s40
    %s44 = sphi 0, %s43
    %s60 = sphi 0, %s44
    %s68 = sphi 0, %s70
    %s71 = sphi 0, %s68
    %s72 = sphi 0, %s71
    %s88 = sphi 0, %s72
    %s96 = sphi 0, %s98
    %s99 = sphi 0, %s96
    %s100 = sphi 0, %s99
    %s116 = sphi 0, %s100
    %s124 = sphi 0, %s126
    %s127 = sphi 0, %s124
    %s128 = sphi 0, %s127
    %s144 = sphi 0, %s128
  $region4: #{tpu_custom_call.1} parent=0 // loop_header_branch
    %12 = sbr.rel (%p10) target = $region8
  $region5: #{tpu_custom_call.1} parent=0 // loop_body
    %s14 = ssub.s32 %s9, 1
    %s15 = ssub.s32 %s9, 2
    %s25 = sadd.s32 1, %s18
    %p26 = scmp.ge.s32.totalorder %s25, 1
    %s27 = scalar_select %p26, 0, %s25
    %s28 = sadd.s32 1, %s17
    %s29 = scalar_select %p26, %s28, %s17
    %p30 = scmp.ge.s32.totalorder %s29, 1
    %s31 = scalar_select %p30, 0, %s29
    %s32 = sadd.s32 1, %s16
    %s33 = scalar_select %p30, %s32, %s16
    %p34 = scmp.ge.s32.totalorder %s33, 2
    %s35 = scalar_select %p34, 0, %s33
    %s36 = ssub.s32 %s16, %s35
    %s37 = ssub.s32 %s17, %s31
    %s38 = sor.u32 %s36, %s37
    %p39 = scmp.eq.s32.totalorder %s38, 0
    %s41 = sadd.s32 %s40, 1
    %s42 = scalar_select %p39, %s40, %s41
    %p45 = pneg %p39
    %p46 = scmp.eq.s32.totalorder %s9, 1
    %p47 = por %p45, %p46
    %p48 = scmp.ne.s32.totalorder %s40, %s43
    %p49 = scmp.eq.s32.totalorder %s9, 0
    %p50 = por %p48, %p49
    %p51 = scmp.ne.s32.totalorder %s40, %s43
    %p52 = scmp.eq.s32.totalorder %s14, 1
    %p53 = por %p51, %p52
    %p54 = scmp.ne.s32.totalorder %s43, %s44
    %p55 = scmp.eq.s32.totalorder %s14, 0
    %p56 = por %p54, %p55
    %p57 = scmp.ne.s32.totalorder %s43, %s44
    %p58 = scmp.eq.s32.totalorder %s15, 1
    %p59 = por %p57, %p58
    %p61 = scmp.ne.s32.totalorder %s44, %s60
    %p62 = scmp.eq.s32.totalorder %s15, 0
    %p63 = por %p61, %p62
    %s64 = ssub.s32 %s16, %s35
    %s65 = ssub.s32 %s18, %s27
    %s66 = sor.u32 %s64, %s65
    %p67 = scmp.eq.s32.totalorder %s66, 0
    %s69 = sadd.s32 %s68, 1
    %s70 = scalar_select %p67, %s68, %s69
    %p73 = pneg %p67
    %p74 = scmp.eq.s32.totalorder %s9, 1
    %p75 = por %p73, %p74
    %p76 = scmp.ne.s32.totalorder %s68, %s71
    %p77 = scmp.eq.s32.totalorder %s9, 0
    %p78 = por %p76, %p77
    %p79 = scmp.ne.s32.totalorder %s68, %s71
    %p80 = scmp.eq.s32.totalorder %s14, 1
    %p81 = por %p79, %p80
    %p82 = scmp.ne.s32.totalorder %s71, %s72
    %p83 = scmp.eq.s32.totalorder %s14, 0
    %p84 = por %p82, %p83
    %p85 = scmp.ne.s32.totalorder %s71, %s72
    %p86 = scmp.eq.s32.totalorder %s15, 1
    %p87 = por %p85, %p86
    %p89 = scmp.ne.s32.totalorder %s72, %s88
    %p90 = scmp.eq.s32.totalorder %s15, 0
    %p91 = por %p89, %p90
    %s92 = ssub.s32 %s16, %s35
    %s93 = ssub.s32 %s17, %s31
    %s94 = sor.u32 %s92, %s93
    %p95 = scmp.eq.s32.totalorder %s94, 0
    %s97 = sadd.s32 %s96, 1
    %s98 = scalar_select %p95, %s96, %s97
    %p101 = pneg %p95
    %p102 = scmp.eq.s32.totalorder %s9, 1
    %p103 = por %p101, %p102
    %p104 = scmp.ne.s32.totalorder %s96, %s99
    %p105 = scmp.eq.s32.totalorder %s9, 0
    %p106 = por %p104, %p105
    %p107 = scmp.ne.s32.totalorder %s96, %s99
    %p108 = scmp.eq.s32.totalorder %s14, 1
    %p109 = por %p107, %p108
    %p110 = scmp.ne.s32.totalorder %s99, %s100
    %p111 = scmp.eq.s32.totalorder %s14, 0
    %p112 = por %p110, %p111
    %p113 = scmp.ne.s32.totalorder %s99, %s100
    %p114 = scmp.eq.s32.totalorder %s15, 1
    %p115 = por %p113, %p114
    %p117 = scmp.ne.s32.totalorder %s100, %s116
    %p118 = scmp.eq.s32.totalorder %s15, 0
    %p119 = por %p117, %p118
    %s120 = ssub.s32 %s16, %s35
    %s121 = ssub.s32 %s17, %s31
    %s122 = sor.u32 %s120, %s121
    %p123 = scmp.eq.s32.totalorder %s122, 0
    %s125 = sadd.s32 %s124, 1
    %s126 = scalar_select %p123, %s124, %s125
    %p129 = pneg %p123
    %p130 = scmp.eq.s32.totalorder %s9, 1
    %p131 = por %p129, %p130
    %p132 = scmp.ne.s32.totalorder %s124, %s127
    %p133 = scmp.eq.s32.totalorder %s9, 0
    %p134 = por %p132, %p133
    %p135 = scmp.ne.s32.totalorder %s124, %s127
    %p136 = scmp.eq.s32.totalorder %s14, 1
    %p137 = por %p135, %p136
    %p138 = scmp.ne.s32.totalorder %s127, %s128
    %p139 = scmp.eq.s32.totalorder %s14, 0
    %p140 = por %p138, %p139
    %p141 = scmp.ne.s32.totalorder %s127, %s128
    %p142 = scmp.eq.s32.totalorder %s15, 1
    %p143 = por %p141, %p142
    %p145 = scmp.ne.s32.totalorder %s128, %s144
    %p146 = scmp.eq.s32.totalorder %s15, 0
    %p147 = por %p145, %p146
    %p148 = scmp.le.s32.totalorder 1, %s9
    %p149 = scmp.lt.s32.totalorder %s9, 3
    %p150 = pnand %p148, %p149
    %p151 = pneg %p150
    // Predicated region
    $region9: #{tpu_custom_call.1} parent=5 // pred_check
      _
    $region10: #{tpu_custom_call.1} parent=5 // pred_check_branch
      %153 = sbr.rel (%p150) target = $region12
    $region11: #{tpu_custom_call.1} parent=5 // pred_region
      %s154 = ssub.s32 %s9, 1
    $region12: #{tpu_custom_call.1} parent=5 // pred_fallthru
      _
    %p155 = scmp.lt.s32.totalorder %s9, 2
    // Predicated region
    $region13: #{tpu_custom_call.1} parent=5 // pred_check
      %p156 = pneg %p155
    $region14: #{tpu_custom_call.1} parent=5 // pred_check_branch
      %158 = sbr.rel (%p156) target = $region16
    $region15: #{tpu_custom_call.1} parent=5 // pred_region
      // Predicated region
      $region17: #{tpu_custom_call.1} parent=15 // pred_check
        %p159 = pneg %p50
      $region18: #{tpu_custom_call.1} parent=15 // pred_check_branch
        %161 = sbr.rel (%p159) target = $region20
      $region19: #{tpu_custom_call.1} parent=15 // pred_region
        %p162 = scmp.lt.s32.totalorder %s16, 1
        %s163 = scalar_select %p162, %s16, 1
        %p164 = scmp.lt.s32.totalorder %s17, 0
        %s165 = scalar_select %p164, %s17, 0
        %s166 = sadd.s32 %s165, %s163
        %s167 = scalar_lea.vmem %s0, %s166
      $region20: #{tpu_custom_call.1} parent=15 // pred_fallthru
        _
      // Predicated region
      $region21: #{tpu_custom_call.1} parent=15 // pred_check
        %p168 = pneg %p78
      $region22: #{tpu_custom_call.1} parent=15 // pred_check_branch
        %170 = sbr.rel (%p168) target = $region24
      $region23: #{tpu_custom_call.1} parent=15 // pred_region
        %p171 = scmp.lt.s32.totalorder %s16, 1
        %s172 = scalar_select %p171, %s16, 1
        %p173 = scmp.lt.s32.totalorder %s18, 0
        %s174 = scalar_select %p173, %s18, 0
        %s175 = sadd.s32 %s174, %s172
        %s176 = smul.addr %s175, 8
        %s177 = scalar_lea.vmem %s1, %s176
      $region24: #{tpu_custom_call.1} parent=15 // pred_fallthru
        _
      // Predicated region
      $region25: #{tpu_custom_call.1} parent=15 // pred_check
        %p178 = pneg %p106
      $region26: #{tpu_custom_call.1} parent=15 // pred_check_branch
        %180 = sbr.rel (%p178) target = $region28
      $region27: #{tpu_custom_call.1} parent=15 // pred_region
        %p181 = scmp.lt.s32.totalorder %s16, 1
        %s182 = scalar_select %p181, %s16, 1
        %p183 = scmp.lt.s32.totalorder %s17, 0
        %s184 = scalar_select %p183, %s17, 0
        %s185 = sadd.s32 %s184, %s182
        %s186 = smul.addr %s185, 8
        %s187 = scalar_lea.vmem %s2, %s186
      $region28: #{tpu_custom_call.1} parent=15 // pred_fallthru
        _
    $region16: #{tpu_custom_call.1} parent=5 // pred_fallthru
      _
    %p188 = scmp.le.s32.totalorder 1, %s9
    %p189 = scmp.lt.s32.totalorder %s9, 3
    %p190 = pnand %p188, %p189
    %p191 = pneg %p190
    // Predicated region
    $region29: #{tpu_custom_call.1} parent=5 // pred_check
      _
    $region30: #{tpu_custom_call.1} parent=5 // pred_check_branch
      %193 = sbr.rel (%p190) target = $region32
    $region31: #{tpu_custom_call.1} parent=5 // pred_region
      %s194 = ssub.s32 %s9, 1
      %p195 = scmp.lt.s32.totalorder %s19, 1
      %s196 = scalar_select %p195, %s19, 1
      %p197 = scmp.lt.s32.totalorder %s20, 0
      %s198 = scalar_select %p197, %s20, 0
      %s199 = sadd.s32 %s198, %s196
      %s200 = scalar_lea.vmem %s0, %s199
      %p201 = pneg %p56
      %p202 = pneg %p53
      %p203 = scmp.lt.s32.totalorder %s19, 1
      %s204 = scalar_select %p203, %s19, 1
      %p205 = scmp.lt.s32.totalorder %s21, 0
      %s206 = scalar_select %p205, %s21, 0
      %s207 = sadd.s32 %s206, %s204
      %s208 = smul.addr %s207, 8
      %s209 = scalar_lea.vmem %s1, %s208
      %p210 = pneg %p84
      %p211 = pneg %p81
      %p212 = scmp.lt.s32.totalorder %s19, 1
      %s213 = scalar_select %p212, %s19, 1
      %p214 = scmp.lt.s32.totalorder %s20, 0
      %s215 = scalar_select %p214, %s20, 0
      %s216 = sadd.s32 %s215, %s213
      %s217 = smul.addr %s216, 8
      %s218 = scalar_lea.vmem %s2, %s217
      %p219 = pneg %p112
      %p220 = pneg %p109
      %p221 = pneg %p140
      %p222 = pneg %p137
      %p223 = scmp.lt.s32.totalorder %s19, 1
      %s224 = scalar_select %p223, %s19, 1
      %p225 = scmp.lt.s32.totalorder %s20, 0
      %s226 = scalar_select %p225, %s20, 0
      %s227 = sadd.s32 %s226, %s224
      %s228 = smul.addr %s227, 8
      %s229 = scalar_lea.vmem %s3, %s228
      %p230 = scmp.lt.s32.totalorder %s19, 1
      %s231 = scalar_select %p230, %s19, 1
      %p232 = scmp.lt.s32.totalorder %s20, 0
      %s233 = scalar_select %p232, %s20, 0
      %s234 = sadd.s32 %s233, %s231
      %s235 = scalar_lea.vmem %s0, %s234
      %p236 = scmp.lt.s32.totalorder %s19, 1
      %s237 = scalar_select %p236, %s19, 1
      %p238 = scmp.lt.s32.totalorder %s21, 0
      %s239 = scalar_select %p238, %s21, 0
      %s240 = sadd.s32 %s239, %s237
      %s241 = smul.addr %s240, 8
      %s242 = scalar_lea.vmem %s1, %s241
      %p243 = scmp.lt.s32.totalorder %s19, 1
      %s244 = scalar_select %p243, %s19, 1
      %p245 = scmp.lt.s32.totalorder %s20, 0
      %s246 = scalar_select %p245, %s20, 0
      %s247 = sadd.s32 %s246, %s244
      %s248 = smul.addr %s247, 8
      %s249 = scalar_lea.vmem %s2, %s248
      %p250 = scmp.lt.s32.totalorder %s19, 1
      %s251 = scalar_select %p250, %s19, 1
      %p252 = scmp.lt.s32.totalorder %s20, 0
      %s253 = scalar_select %p252, %s20, 0
      %s254 = sadd.s32 %s253, %s251
      %s255 = smul.addr %s254, 8
      %s256 = scalar_lea.vmem %s3, %s255
      %p257 = scmp.eq.s32.totalorder %s21, 0
      // Predicated region
      $region33: #{tpu_custom_call.1} parent=31 // pred_check
        %p258 = pneg %p257
      $region34: #{tpu_custom_call.1} parent=31 // pred_check_branch
        %260 = sbr.rel (%p258) target = $region36
      $region35: #{tpu_custom_call.1} parent=31 // pred_region
        %vm261 = vcmask 260096
        %262 = vst.msk [vmem:[#allocation2] sm:$0x7f] %vm261, 0.0
      $region36: #{tpu_custom_call.1} parent=31 // pred_fallthru
        _
      %v263 = vld [vmem:[%s242] sm:$0x7f]
      %v264 = vld [vmem:[%s235] sm:$0x1]
      %v265 = vlaneseq
      %v266 = vshrl.u32 %v265, 7
      %v267 = vadd.s32 %v266, 8
      %s268 = smul.u32 %s21, 16
      %v269 = vstv %s268
      %v270 = vadd.s32 %v266, %v269
      %v271 = vadd.s32 %v267, %v269
      %v272 = vlaneseq
      %v273 = vshrl.u32 %v272, 7
      %v274 = vsub.s32 0, %v273
      %v275 = vrot.slane %v264, %v274
      %vm276 = vcmp.eq.s32.totalorder %v270, %v275
      %vm277 = vcmp.eq.s32.totalorder %v271, %v275
      %v278 = vsel %vm276, 1, 0
      %v279 = vsel %vm277, 1, 0
      %v280 = vcvt.s32.f32 %v278
      %v281 = vcvt.s32.f32 %v279
      %v282 = vld [vmem:[#allocation2] sm:$0x7f]
      %vm283 = vcmask 130048
      %v285 = vsel %vm283, %v263, 0
      %287 = vmatprep.subr.mxu0 0.0
      %v288 = vand.u32 %v280, 4294901760
      %289 = vmatpush1.msra.mxu0 %v288
      %290 = vmatprep.subr.mxu0 0.0
      %v291 = vand.u32 %v281, 4294901760
      %292 = vmatpush1.msra.mxu0 %v291
      %293 = vmatprep.subr.mxu0 0.0
      %294 = vmatpush1.msra.mxu0 0.0
      %295 = vmatprep.subr.mxu0 0.0
      %296 = vmatpush1.msra.mxu0 0.0
      %297 = vmatprep.subr.mxu0 0.0
      %298 = vmatpush1.msra.mxu0 0.0
      %299 = vmatprep.subr.mxu0 0.0
      %300 = vmatpush1.msra.mxu0 0.0
      %301 = vmatprep.subr.mxu0 0.0
      %302 = vmatpush1.msra.mxu0 0.0
      %303 = vmatprep.subr.mxu0 0.0
      %304 = vmatpush1.msra.mxu0 0.0
      %305 = vmatprep.subr.mxu0 0.0
      %306 = vmatpush1.msra.mxu0 0.0
      %307 = vmatprep.subr.mxu0 0.0
      %308 = vmatpush1.msra.mxu0 0.0
      %309 = vmatprep.subr.mxu0 0.0
      %310 = vmatpush1.msra.mxu0 0.0
      %311 = vmatprep.subr.mxu0 0.0
      %312 = vmatpush1.msra.mxu0 0.0
      %313 = vmatprep.subr.mxu0 0.0
      %314 = vmatpush1.msra.mxu0 0.0
      %315 = vmatprep.subr.mxu0 0.0
      %316 = vmatpush1.msra.mxu0 0.0
      %317 = vmatprep.subr.mxu0 0.0
      %318 = vmatpush1.msra.mxu0 0.0
      %319 = vmatprep.subr.mxu0 0.0
      %320 = vmatpush1.msra.mxu0 0.0
      %321 = vmatprep.subr.mxu0 0.0
      %322 = vmatpush1.msra.mxu0 0.0
      %323 = vmatprep.subr.mxu0 0.0
      %324 = vmatpush1.msra.mxu0 0.0
      %325 = vmatprep.subr.mxu0 0.0
      %326 = vmatpush1.msra.mxu0 0.0
      %327 = vmatprep.subr.mxu0 0.0
      %328 = vmatpush1.msra.mxu0 0.0
      %329 = vmatprep.subr.mxu0 0.0
      %330 = vmatpush1.msra.mxu0 0.0
      %331 = vmatprep.subr.mxu0 0.0
      %332 = vmatpush1.msra.mxu0 0.0
      %333 = vmatprep.subr.mxu0 0.0
      %334 = vmatpush1.msra.mxu0 0.0
      %335 = vmatprep.subr.mxu0 0.0
      %336 = vmatpush1.msra.mxu0 0.0
      %337 = vmatprep.subr.mxu0 0.0
      %338 = vmatpush1.msra.mxu0 0.0
      %339 = vmatprep.subr.mxu0 0.0
      %340 = vmatpush1.msra.mxu0 0.0
      %341 = vmatprep.subr.mxu0 0.0
      %342 = vmatpush1.msra.mxu0 0.0
      %343 = vmatprep.subr.mxu0 0.0
      %344 = vmatpush1.msra.mxu0 0.0
      %345 = vmatprep.subr.mxu0 0.0
      %346 = vmatpush1.msra.mxu0 0.0
      %347 = vmatprep.subr.mxu0 0.0
      %348 = vmatpush1.msra.mxu0 0.0
      %349 = vmatprep.subr.mxu0 0.0
      %350 = vmatpush1.msra.mxu0 0.0
      %351 = vmatprep.subr.mxu0 0.0
      %352 = vmatpush1.msra.mxu0 0.0
      %353 = vmatprep.mubr.f32.mxu0 0.0
      %v354 = vand.u32 %v285, 4294901760
      %v355 = vsub.f32 %v285, %v354
      %v356 = vand.u32 %v355, 4294901760
      %v357 = vsub.f32 %v355, %v356
      %v358 = vand.u32 %v357, 4294901760
      %359 = vmatmul.mubr.f32.gmra.mrb[0].mxu0 %v358
      %v360 = vpop.f32.mrb[0].mxu0
      %v361 = vadd.f32 0.0, %v360
      %v362 = vpop.f32.mrb[0].mxu0
      %363 = vdwg.mxu0
      %364 = vmatprep.subr.mxu0 0.0
      %v365 = vand.u32 %v280, 4294901760
      %v366 = vsub.f32 %v280, %v365
      %v367 = vand.u32 %v366, 4294901760
      %v368 = vsub.f32 %v366, %v367
      %v369 = vand.u32 %v368, 4294901760
      %370 = vmatpush1.msra.mxu0 %v369
      %371 = vmatprep.subr.mxu0 0.0
      %v372 = vand.u32 %v281, 4294901760
      %v373 = vsub.f32 %v281, %v372
      %v374 = vand.u32 %v373, 4294901760
      %v375 = vsub.f32 %v373, %v374
      %v376 = vand.u32 %v375, 4294901760
      %377 = vmatpush1.msra.mxu0 %v376
      %378 = vmatprep.subr.mxu0 0.0
      %379 = vmatpush1.msra.mxu0 0.0
      %380 = vmatprep.subr.mxu0 0.0
      %381 = vmatpush1.msra.mxu0 0.0
      %382 = vmatprep.subr.mxu0 0.0
      %383 = vmatpush1.msra.mxu0 0.0
      %384 = vmatprep.subr.mxu0 0.0
      %385 = vmatpush1.msra.mxu0 0.0
      %386 = vmatprep.subr.mxu0 0.0
      %387 = vmatpush1.msra.mxu0 0.0
      %388 = vmatprep.subr.mxu0 0.0
      %389 = vmatpush1.msra.mxu0 0.0
      %390 = vmatprep.subr.mxu0 0.0
      %391 = vmatpush1.msra.mxu0 0.0
      %392 = vmatprep.subr.mxu0 0.0
      %393 = vmatpush1.msra.mxu0 0.0
      %394 = vmatprep.subr.mxu0 0.0
      %395 = vmatpush1.msra.mxu0 0.0
      %396 = vmatprep.subr.mxu0 0.0
      %397 = vmatpush1.msra.mxu0 0.0
      %398 = vmatprep.subr.mxu0 0.0
      %399 = vmatpush1.msra.mxu0 0.0
      %400 = vmatprep.subr.mxu0 0.0
      %401 = vmatpush1.msra.mxu0 0.0
      %402 = vmatprep.subr.mxu0 0.0
      %403 = vmatpush1.msra.mxu0 0.0
      %404 = vmatprep.subr.mxu0 0.0
      %405 = vmatpush1.msra.mxu0 0.0
      %406 = vmatprep.subr.mxu0 0.0
      %407 = vmatpush1.msra.mxu0 0.0
      %408 = vmatprep.subr.mxu0 0.0
      %409 = vmatpush1.msra.mxu0 0.0
      %410 = vmatprep.subr.mxu0 0.0
      %411 = vmatpush1.msra.mxu0 0.0
      %412 = vmatprep.subr.mxu0 0.0
      %413 = vmatpush1.msra.mxu0 0.0
      %414 = vmatprep.subr.mxu0 0.0
      %415 = vmatpush1.msra.mxu0 0.0
      %416 = vmatprep.subr.mxu0 0.0
      %417 = vmatpush1.msra.mxu0 0.0
      %418 = vmatprep.subr.mxu0 0.0
      %419 = vmatpush1.msra.mxu0 0.0
      %420 = vmatprep.subr.mxu0 0.0
      %421 = vmatpush1.msra.mxu0 0.0
      %422 = vmatprep.subr.mxu0 0.0
      %423 = vmatpush1.msra.mxu0 0.0
      %424 = vmatprep.subr.mxu0 0.0
      %425 = vmatpush1.msra.mxu0 0.0
      %426 = vmatprep.subr.mxu0 0.0
      %427 = vmatpush1.msra.mxu0 0.0
      %428 = vmatprep.subr.mxu0 0.0
      %429 = vmatpush1.msra.mxu0 0.0
      %430 = vmatprep.subr.mxu0 0.0
      %431 = vmatpush1.msra.mxu0 0.0
      %432 = vmatprep.subr.mxu0 0.0
      %433 = vmatpush1.msra.mxu0 0.0
      %434 = vmatprep.subr.mxu0 0.0
      %435 = vmatpush1.msra.mxu0 0.0
      %436 = vmatprep.subr.mxu0 0.0
      %437 = vmatpush1.msra.mxu0 0.0
      %438 = vmatprep.mubr.f32.mxu0 0.0
      %v439 = vand.u32 %v285, 4294901760
      %440 = vmatmul.mubr.f32.gmra.mrb[0].mxu0 %v439
      %v441 = vpop.f32.mrb[0].mxu0
      %v442 = vadd.f32 %v361, %v441
      %v443 = vpop.f32.mrb[0].mxu0
      %444 = vdwg.mxu0
      %445 = vmatprep.subr.mxu0 0.0
      %v446 = vand.u32 %v280, 4294901760
      %v447 = vsub.f32 %v280, %v446
      %448 = vmatpush1.msra.mxu0 %v447
      %449 = vmatprep.subr.mxu0 0.0
      %v450 = vand.u32 %v281, 4294901760
      %v451 = vsub.f32 %v281, %v450
      %452 = vmatpush1.msra.mxu0 %v451
      %453 = vmatprep.subr.mxu0 0.0
      %454 = vmatpush1.msra.mxu0 0.0
      %455 = vmatprep.subr.mxu0 0.0
      %456 = vmatpush1.msra.mxu0 0.0
      %457 = vmatprep.subr.mxu0 0.0
      %458 = vmatpush1.msra.mxu0 0.0
      %459 = vmatprep.subr.mxu0 0.0
      %460 = vmatpush1.msra.mxu0 0.0
      %461 = vmatprep.subr.mxu0 0.0
      %462 = vmatpush1.msra.mxu0 0.0
      %463 = vmatprep.subr.mxu0 0.0
      %464 = vmatpush1.msra.mxu0 0.0
      %465 = vmatprep.subr.mxu0 0.0
      %466 = vmatpush1.msra.mxu0 0.0
      %467 = vmatprep.subr.mxu0 0.0
      %468 = vmatpush1.msra.mxu0 0.0
      %469 = vmatprep.subr.mxu0 0.0
      %470 = vmatpush1.msra.mxu0 0.0
      %471 = vmatprep.subr.mxu0 0.0
      %472 = vmatpush1.msra.mxu0 0.0
      %473 = vmatprep.subr.mxu0 0.0
      %474 = vmatpush1.msra.mxu0 0.0
      %475 = vmatprep.subr.mxu0 0.0
      %476 = vmatpush1.msra.mxu0 0.0
      %477 = vmatprep.subr.mxu0 0.0
      %478 = vmatpush1.msra.mxu0 0.0
      %479 = vmatprep.subr.mxu0 0.0
      %480 = vmatpush1.msra.mxu0 0.0
      %481 = vmatprep.subr.mxu0 0.0
      %482 = vmatpush1.msra.mxu0 0.0
      %483 = vmatprep.subr.mxu0 0.0
      %484 = vmatpush1.msra.mxu0 0.0
      %485 = vmatprep.subr.mxu0 0.0
      %486 = vmatpush1.msra.mxu0 0.0
      %487 = vmatprep.subr.mxu0 0.0
      %488 = vmatpush1.msra.mxu0 0.0
      %489 = vmatprep.subr.mxu0 0.0
      %490 = vmatpush1.msra.mxu0 0.0
      %491 = vmatprep.subr.mxu0 0.0
      %492 = vmatpush1.msra.mxu0 0.0
      %493 = vmatprep.subr.mxu0 0.0
      %494 = vmatpush1.msra.mxu0 0.0
      %495 = vmatprep.subr.mxu0 0.0
      %496 = vmatpush1.msra.mxu0 0.0
      %497 = vmatprep.subr.mxu0 0.0
      %498 = vmatpush1.msra.mxu0 0.0
      %499 = vmatprep.subr.mxu0 0.0
      %500 = vmatpush1.msra.mxu0 0.0
      %501 = vmatprep.subr.mxu0 0.0
      %502 = vmatpush1.msra.mxu0 0.0
      %503 = vmatprep.subr.mxu0 0.0
      %504 = vmatpush1.msra.mxu0 0.0
      %505 = vmatprep.subr.mxu0 0.0
      %506 = vmatpush1.msra.mxu0 0.0
      %507 = vmatprep.subr.mxu0 0.0
      %508 = vmatpush1.msra.mxu0 0.0
      %509 = vmatprep.subr.mxu0 0.0
      %510 = vmatpush1.msra.mxu0 0.0
      %511 = vmatprep.subr.mxu0 0.0
      %512 = vmatpush1.msra.mxu0 0.0
      %513 = vmatprep.mubr.f32.mxu0 0.0
      %v514 = vand.u32 %v285, 4294901760
      %v515 = vsub.f32 %v285, %v514
      %516 = vmatmul.mubr.f32.gmra.mrb[0].mxu0 %v515
      %v517 = vpop.f32.mrb[0].mxu0
      %v518 = vadd.f32 %v442, %v517
      %v519 = vpop.f32.mrb[0].mxu0
      %520 = vdwg.mxu0
      %521 = vmatprep.subr.mxu0 0.0
      %v522 = vand.u32 %v280, 4294901760
      %523 = vmatpush1.msra.mxu0 %v522
      %524 = vmatprep.subr.mxu0 0.0
      %v525 = vand.u32 %v281, 4294901760
      %526 = vmatpush1.msra.mxu0 %v525
      %527 = vmatprep.subr.mxu0 0.0
      %528 = vmatpush1.msra.mxu0 0.0
      %529 = vmatprep.subr.mxu0 0.0
      %530 = vmatpush1.msra.mxu0 0.0
      %531 = vmatprep.subr.mxu0 0.0
      %532 = vmatpush1.msra.mxu0 0.0
      %533 = vmatprep.subr.mxu0 0.0
      %534 = vmatpush1.msra.mxu0 0.0
      %535 = vmatprep.subr.mxu0 0.0
      %536 = vmatpush1.msra.mxu0 0.0
      %537 = vmatprep.subr.mxu0 0.0
      %538 = vmatpush1.msra.mxu0 0.0
      %539 = vmatprep.subr.mxu0 0.0
      %540 = vmatpush1.msra.mxu0 0.0
      %541 = vmatprep.subr.mxu0 0.0
      %542 = vmatpush1.msra.mxu0 0.0
      %543 = vmatprep.subr.mxu0 0.0
      %544 = vmatpush1.msra.mxu0 0.0
      %545 = vmatprep.subr.mxu0 0.0
      %546 = vmatpush1.msra.mxu0 0.0
      %547 = vmatprep.subr.mxu0 0.0
      %548 = vmatpush1.msra.mxu0 0.0
      %549 = vmatprep.subr.mxu0 0.0
      %550 = vmatpush1.msra.mxu0 0.0
      %551 = vmatprep.subr.mxu0 0.0
      %552 = vmatpush1.msra.mxu0 0.0
      %553 = vmatprep.subr.mxu0 0.0
      %554 = vmatpush1.msra.mxu0 0.0
      %555 = vmatprep.subr.mxu0 0.0
      %556 = vmatpush1.msra.mxu0 0.0
      %557 = vmatprep.subr.mxu0 0.0
      %558 = vmatpush1.msra.mxu0 0.0
      %559 = vmatprep.subr.mxu0 0.0
      %560 = vmatpush1.msra.mxu0 0.0
      %561 = vmatprep.subr.mxu0 0.0
      %562 = vmatpush1.msra.mxu0 0.0
      %563 = vmatprep.subr.mxu0 0.0
      %564 = vmatpush1.msra.mxu0 0.0
      %565 = vmatprep.subr.mxu0 0.0
      %566 = vmatpush1.msra.mxu0 0.0
      %567 = vmatprep.subr.mxu0 0.0
      %568 = vmatpush1.msra.mxu0 0.0
      %569 = vmatprep.subr.mxu0 0.0
      %570 = vmatpush1.msra.mxu0 0.0
      %571 = vmatprep.subr.mxu0 0.0
      %572 = vmatpush1.msra.mxu0 0.0
      %573 = vmatprep.subr.mxu0 0.0
      %574 = vmatpush1.msra.mxu0 0.0
      %575 = vmatprep.subr.mxu0 0.0
      %576 = vmatpush1.msra.mxu0 0.0
      %577 = vmatprep.subr.mxu0 0.0
      %578 = vmatpush1.msra.mxu0 0.0
      %579 = vmatprep.subr.mxu0 0.0
      %580 = vmatpush1.msra.mxu0 0.0
      %581 = vmatprep.subr.mxu0 0.0
      %582 = vmatpush1.msra.mxu0 0.0
      %583 = vmatprep.subr.mxu0 0.0
      %584 = vmatpush1.msra.mxu0 0.0
      %585 = vmatprep.subr.mxu0 0.0
      %586 = vmatpush1.msra.mxu0 0.0
      %587 = vmatprep.mubr.f32.mxu0 0.0
      %v588 = vand.u32 %v285, 4294901760
      %v589 = vsub.f32 %v285, %v588
      %v590 = vand.u32 %v589, 4294901760
      %591 = vmatmul.mubr.f32.gmra.mrb[0].mxu0 %v590
      %v592 = vpop.f32.mrb[0].mxu0
      %v593 = vadd.f32 %v518, %v592
      %v594 = vpop.f32.mrb[0].mxu0
      %595 = vdwg.mxu0
      %596 = vmatprep.subr.mxu0 0.0
      %v597 = vand.u32 %v280, 4294901760
      %v598 = vsub.f32 %v280, %v597
      %v599 = vand.u32 %v598, 4294901760
      %600 = vmatpush1.msra.mxu0 %v599
      %601 = vmatprep.subr.mxu0 0.0
      %v602 = vand.u32 %v281, 4294901760
      %v603 = vsub.f32 %v281, %v602
      %v604 = vand.u32 %v603, 4294901760
      %605 = vmatpush1.msra.mxu0 %v604
      %606 = vmatprep.subr.mxu0 0.0
      %607 = vmatpush1.msra.mxu0 0.0
      %608 = vmatprep.subr.mxu0 0.0
      %609 = vmatpush1.msra.mxu0 0.0
      %610 = vmatprep.subr.mxu0 0.0
      %611 = vmatpush1.msra.mxu0 0.0
      %612 = vmatprep.subr.mxu0 0.0
      %613 = vmatpush1.msra.mxu0 0.0
      %614 = vmatprep.subr.mxu0 0.0
      %615 = vmatpush1.msra.mxu0 0.0
      %616 = vmatprep.subr.mxu0 0.0
      %617 = vmatpush1.msra.mxu0 0.0
      %618 = vmatprep.subr.mxu0 0.0
      %619 = vmatpush1.msra.mxu0 0.0
      %620 = vmatprep.subr.mxu0 0.0
      %621 = vmatpush1.msra.mxu0 0.0
      %622 = vmatprep.subr.mxu0 0.0
      %623 = vmatpush1.msra.mxu0 0.0
      %624 = vmatprep.subr.mxu0 0.0
      %625 = vmatpush1.msra.mxu0 0.0
      %626 = vmatprep.subr.mxu0 0.0
      %627 = vmatpush1.msra.mxu0 0.0
      %628 = vmatprep.subr.mxu0 0.0
      %629 = vmatpush1.msra.mxu0 0.0
      %630 = vmatprep.subr.mxu0 0.0
      %631 = vmatpush1.msra.mxu0 0.0
      %632 = vmatprep.subr.mxu0 0.0
      %633 = vmatpush1.msra.mxu0 0.0
      %634 = vmatprep.subr.mxu0 0.0
      %635 = vmatpush1.msra.mxu0 0.0
      %636 = vmatprep.subr.mxu0 0.0
      %637 = vmatpush1.msra.mxu0 0.0
      %638 = vmatprep.subr.mxu0 0.0
      %639 = vmatpush1.msra.mxu0 0.0
      %640 = vmatprep.subr.mxu0 0.0
      %641 = vmatpush1.msra.mxu0 0.0
      %642 = vmatprep.subr.mxu0 0.0
      %643 = vmatpush1.msra.mxu0 0.0
      %644 = vmatprep.subr.mxu0 0.0
      %645 = vmatpush1.msra.mxu0 0.0
      %646 = vmatprep.subr.mxu0 0.0
      %647 = vmatpush1.msra.mxu0 0.0
      %648 = vmatprep.subr.mxu0 0.0
      %649 = vmatpush1.msra.mxu0 0.0
      %650 = vmatprep.subr.mxu0 0.0
      %651 = vmatpush1.msra.mxu0 0.0
      %652 = vmatprep.subr.mxu0 0.0
      %653 = vmatpush1.msra.mxu0 0.0
      %654 = vmatprep.subr.mxu0 0.0
      %655 = vmatpush1.msra.mxu0 0.0
      %656 = vmatprep.subr.mxu0 0.0
      %657 = vmatpush1.msra.mxu0 0.0
      %658 = vmatprep.subr.mxu0 0.0
      %659 = vmatpush1.msra.mxu0 0.0
      %660 = vmatprep.subr.mxu0 0.0
      %661 = vmatpush1.msra.mxu0 0.0
      %662 = vmatprep.subr.mxu0 0.0
      %663 = vmatpush1.msra.mxu0 0.0
      %664 = vmatprep.subr.mxu0 0.0
      %665 = vmatpush1.msra.mxu0 0.0
      %666 = vmatprep.mubr.f32.mxu0 0.0
      %v667 = vand.u32 %v285, 4294901760
      %668 = vmatmul.mubr.f32.gmra.mrb[0].mxu0 %v667
      %v669 = vpop.f32.mrb[0].mxu0
      %v670 = vadd.f32 %v593, %v669
      %v671 = vpop.f32.mrb[0].mxu0
      %672 = vdwg.mxu0
      %673 = vmatprep.subr.mxu0 0.0
      %v674 = vand.u32 %v280, 4294901760
      %675 = vmatpush1.msra.mxu0 %v674
      %676 = vmatprep.subr.mxu0 0.0
      %v677 = vand.u32 %v281, 4294901760
      %678 = vmatpush1.msra.mxu0 %v677
      %679 = vmatprep.subr.mxu0 0.0
      %680 = vmatpush1.msra.mxu0 0.0
      %681 = vmatprep.subr.mxu0 0.0
      %682 = vmatpush1.msra.mxu0 0.0
      %683 = vmatprep.subr.mxu0 0.0
      %684 = vmatpush1.msra.mxu0 0.0
      %685 = vmatprep.subr.mxu0 0.0
      %686 = vmatpush1.msra.mxu0 0.0
      %687 = vmatprep.subr.mxu0 0.0
      %688 = vmatpush1.msra.mxu0 0.0
      %689 = vmatprep.subr.mxu0 0.0
      %690 = vmatpush1.msra.mxu0 0.0
      %691 = vmatprep.subr.mxu0 0.0
      %692 = vmatpush1.msra.mxu0 0.0
      %693 = vmatprep.subr.mxu0 0.0
      %694 = vmatpush1.msra.mxu0 0.0
      %695 = vmatprep.subr.mxu0 0.0
      %696 = vmatpush1.msra.mxu0 0.0
      %697 = vmatprep.subr.mxu0 0.0
      %698 = vmatpush1.msra.mxu0 0.0
      %699 = vmatprep.subr.mxu0 0.0
      %700 = vmatpush1.msra.mxu0 0.0
      %701 = vmatprep.subr.mxu0 0.0
      %702 = vmatpush1.msra.mxu0 0.0
      %703 = vmatprep.subr.mxu0 0.0
      %704 = vmatpush1.msra.mxu0 0.0
      %705 = vmatprep.subr.mxu0 0.0
      %706 = vmatpush1.msra.mxu0 0.0
      %707 = vmatprep.subr.mxu0 0.0
      %708 = vmatpush1.msra.mxu0 0.0
      %709 = vmatprep.subr.mxu0 0.0
      %710 = vmatpush1.msra.mxu0 0.0
      %711 = vmatprep.subr.mxu0 0.0
      %712 = vmatpush1.msra.mxu0 0.0
      %713 = vmatprep.subr.mxu0 0.0
      %714 = vmatpush1.msra.mxu0 0.0
      %715 = vmatprep.subr.mxu0 0.0
      %716 = vmatpush1.msra.mxu0 0.0
      %717 = vmatprep.subr.mxu0 0.0
      %718 = vmatpush1.msra.mxu0 0.0
      %719 = vmatprep.subr.mxu0 0.0
      %720 = vmatpush1.msra.mxu0 0.0
      %721 = vmatprep.subr.mxu0 0.0
      %722 = vmatpush1.msra.mxu0 0.0
      %723 = vmatprep.subr.mxu0 0.0
      %724 = vmatpush1.msra.mxu0 0.0
      %725 = vmatprep.subr.mxu0 0.0
      %726 = vmatpush1.msra.mxu0 0.0
      %727 = vmatprep.subr.mxu0 0.0
      %728 = vmatpush1.msra.mxu0 0.0
      %729 = vmatprep.subr.mxu0 0.0
      %730 = vmatpush1.msra.mxu0 0.0
      %731 = vmatprep.subr.mxu0 0.0
      %732 = vmatpush1.msra.mxu0 0.0
      %733 = vmatprep.subr.mxu0 0.0
      %734 = vmatpush1.msra.mxu0 0.0
      %735 = vmatprep.subr.mxu0 0.0
      %736 = vmatpush1.msra.mxu0 0.0
      %737 = vmatprep.subr.mxu0 0.0
      %738 = vmatpush1.msra.mxu0 0.0
      %739 = vmatprep.mubr.f32.mxu0 0.0
      %v740 = vand.u32 %v285, 4294901760
      %741 = vmatmul.mubr.f32.gmra.mrb[0].mxu0 %v740
      %v742 = vpop.f32.mrb[0].mxu0
      %v743 = vadd.f32 %v670, %v742
      %v744 = vpop.f32.mrb[0].mxu0
      %745 = vdwg.mxu0
      %v746 = vadd.f32 %v282, %v743
      %vm747 = vcmask 260096
      %748 = vst.msk [vmem:[#allocation2] sm:$0x7f] %vm747, %v746
      // Predicated region
      $region37: #{tpu_custom_call.1} parent=31 // pred_check
        %p749 = pneg %p257
      $region38: #{tpu_custom_call.1} parent=31 // pred_check_branch
        %751 = sbr.rel (%p749) target = $region40
      $region39: #{tpu_custom_call.1} parent=31 // pred_region
        %v752 = vld [vmem:[%s249] sm:$0x7f]
        %v753 = vlaneseq
        %v754 = vand.u32 %v753, 127
        %v755 = vmul.u32 %v266, 8
        %vm756 = vcmp.ge.s32.totalorder %v754, %v755
        %v757 = vadd.s32 %v755, 8
        %vm758 = vcmp.lt.s32.totalorder %v754, %v757
        %vm759 = vmand %vm756, %vm758
        %v760 = vsel %vm759, 1, 0
        %v761 = vcvt.s32.f32 %v760
        %vm762 = vcmask 31744
        %v764 = vsel %vm762, %v752, 0
        %vm766 = vcmask 1043456
        %v768 = vsel %vm766, %v761, 0
        %770 = vmatprep.subr.mxu0 0.0
        %v771 = vand.u32 %v768, 4294901760
        %772 = vmatpush1.msra.mxu0 %v771
        %773 = vmatprep.subr.mxu0 0.0
        %774 = vmatpush1.msra.mxu0 0.0
        %775 = vmatprep.subr.mxu0 0.0
        %776 = vmatpush1.msra.mxu0 0.0
        %777 = vmatprep.subr.mxu0 0.0
        %778 = vmatpush1.msra.mxu0 0.0
        %779 = vmatprep.subr.mxu0 0.0
        %780 = vmatpush1.msra.mxu0 0.0
        %781 = vmatprep.subr.mxu0 0.0
        %782 = vmatpush1.msra.mxu0 0.0
        %783 = vmatprep.subr.mxu0 0.0
        %784 = vmatpush1.msra.mxu0 0.0
        %785 = vmatprep.subr.mxu0 0.0
        %786 = vmatpush1.msra.mxu0 0.0
        %787 = vmatprep.subr.mxu0 0.0
        %788 = vmatpush1.msra.mxu0 0.0
        %789 = vmatprep.subr.mxu0 0.0
        %790 = vmatpush1.msra.mxu0 0.0
        %791 = vmatprep.subr.mxu0 0.0
        %792 = vmatpush1.msra.mxu0 0.0
        %793 = vmatprep.subr.mxu0 0.0
        %794 = vmatpush1.msra.mxu0 0.0
        %795 = vmatprep.subr.mxu0 0.0
        %796 = vmatpush1.msra.mxu0 0.0
        %797 = vmatprep.subr.mxu0 0.0
        %798 = vmatpush1.msra.mxu0 0.0
        %799 = vmatprep.subr.mxu0 0.0
        %800 = vmatpush1.msra.mxu0 0.0
        %801 = vmatprep.subr.mxu0 0.0
        %802 = vmatpush1.msra.mxu0 0.0
        %803 = vmatprep.subr.mxu0 0.0
        %804 = vmatpush1.msra.mxu0 0.0
        %805 = vmatprep.subr.mxu0 0.0
        %806 = vmatpush1.msra.mxu0 0.0
        %807 = vmatprep.subr.mxu0 0.0
        %808 = vmatpush1.msra.mxu0 0.0
        %809 = vmatprep.subr.mxu0 0.0
        %810 = vmatpush1.msra.mxu0 0.0
        %811 = vmatprep.subr.mxu0 0.0
        %812 = vmatpush1.msra.mxu0 0.0
        %813 = vmatprep.subr.mxu0 0.0
        %814 = vmatpush1.msra.mxu0 0.0
        %815 = vmatprep.subr.mxu0 0.0
        %816 = vmatpush1.msra.mxu0 0.0
        %817 = vmatprep.subr.mxu0 0.0
        %818 = vmatpush1.msra.mxu0 0.0
        %819 = vmatprep.subr.mxu0 0.0
        %820 = vmatpush1.msra.mxu0 0.0
        %821 = vmatprep.subr.mxu0 0.0
        %822 = vmatpush1.msra.mxu0 0.0
        %823 = vmatprep.subr.mxu0 0.0
        %824 = vmatpush1.msra.mxu0 0.0
        %825 = vmatprep.subr.mxu0 0.0
        %826 = vmatpush1.msra.mxu0 0.0
        %827 = vmatprep.subr.mxu0 0.0
        %828 = vmatpush1.msra.mxu0 0.0
        %829 = vmatprep.subr.mxu0 0.0
        %830 = vmatpush1.msra.mxu0 0.0
        %831 = vmatprep.subr.mxu0 0.0
        %832 = vmatpush1.msra.mxu0 0.0
        %833 = vmatprep.subr.mxu0 0.0
        %834 = vmatpush1.msra.mxu0 0.0
        %835 = vmatprep.mubr.f32.mxu0 0.0
        %v836 = vand.u32 %v764, 4294901760
        %v837 = vsub.f32 %v764, %v836
        %v838 = vand.u32 %v837, 4294901760
        %v839 = vsub.f32 %v837, %v838
        %v840 = vand.u32 %v839, 4294901760
        %841 = vmatmul.mubr.f32.gmra.mrb[0].mxu0 %v840
        %v842 = vpop.f32.mrb[0].mxu0
        %v843 = vadd.f32 0.0, %v842
        %v844 = vpop.f32.mrb[0].mxu0
        %845 = vdwg.mxu0
        %846 = vmatprep.subr.mxu0 0.0
        %v847 = vand.u32 %v768, 4294901760
        %v848 = vsub.f32 %v768, %v847
        %v849 = vand.u32 %v848, 4294901760
        %v850 = vsub.f32 %v848, %v849
        %v851 = vand.u32 %v850, 4294901760
        %852 = vmatpush1.msra.mxu0 %v851
        %853 = vmatprep.subr.mxu0 0.0
        %854 = vmatpush1.msra.mxu0 0.0
        %855 = vmatprep.subr.mxu0 0.0
        %856 = vmatpush1.msra.mxu0 0.0
        %857 = vmatprep.subr.mxu0 0.0
        %858 = vmatpush1.msra.mxu0 0.0
        %859 = vmatprep.subr.mxu0 0.0
        %860 = vmatpush1.msra.mxu0 0.0
        %861 = vmatprep.subr.mxu0 0.0
        %862 = vmatpush1.msra.mxu0 0.0
        %863 = vmatprep.subr.mxu0 0.0
        %864 = vmatpush1.msra.mxu0 0.0
        %865 = vmatprep.subr.mxu0 0.0
        %866 = vmatpush1.msra.mxu0 0.0
        %867 = vmatprep.subr.mxu0 0.0
        %868 = vmatpush1.msra.mxu0 0.0
        %869 = vmatprep.subr.mxu0 0.0
        %870 = vmatpush1.msra.mxu0 0.0
        %871 = vmatprep.subr.mxu0 0.0
        %872 = vmatpush1.msra.mxu0 0.0
        %873 = vmatprep.subr.mxu0 0.0
        %874 = vmatpush1.msra.mxu0 0.0
        %875 = vmatprep.subr.mxu0 0.0
        %876 = vmatpush1.msra.mxu0 0.0
        %877 = vmatprep.subr.mxu0 0.0
        %878 = vmatpush1.msra.mxu0 0.0
        %879 = vmatprep.subr.mxu0 0.0
        %880 = vmatpush1.msra.mxu0 0.0
        %881 = vmatprep.subr.mxu0 0.0
        %882 = vmatpush1.msra.mxu0 0.0
        %883 = vmatprep.subr.mxu0 0.0
        %884 = vmatpush1.msra.mxu0 0.0
        %885 = vmatprep.subr.mxu0 0.0
        %886 = vmatpush1.msra.mxu0 0.0
        %887 = vmatprep.subr.mxu0 0.0
        %888 = vmatpush1.msra.mxu0 0.0
        %889 = vmatprep.subr.mxu0 0.0
        %890 = vmatpush1.msra.mxu0 0.0
        %891 = vmatprep.subr.mxu0 0.0
        %892 = vmatpush1.msra.mxu0 0.0
        %893 = vmatprep.subr.mxu0 0.0
        %894 = vmatpush1.msra.mxu0 0.0
        %895 = vmatprep.subr.mxu0 0.0
        %896 = vmatpush1.msra.mxu0 0.0
        %897 = vmatprep.subr.mxu0 0.0
        %898 = vmatpush1.msra.mxu0 0.0
        %899 = vmatprep.subr.mxu0 0.0
        %900 = vmatpush1.msra.mxu0 0.0
        %901 = vmatprep.subr.mxu0 0.0
        %902 = vmatpush1.msra.mxu0 0.0
        %903 = vmatprep.subr.mxu0 0.0
        %904 = vmatpush1.msra.mxu0 0.0
        %905 = vmatprep.subr.mxu0 0.0
        %906 = vmatpush1.msra.mxu0 0.0
        %907 = vmatprep.subr.mxu0 0.0
        %908 = vmatpush1.msra.mxu0 0.0
        %909 = vmatprep.subr.mxu0 0.0
        %910 = vmatpush1.msra.mxu0 0.0
        %911 = vmatprep.subr.mxu0 0.0
        %912 = vmatpush1.msra.mxu0 0.0
        %913 = vmatprep.subr.mxu0 0.0
        %914 = vmatpush1.msra.mxu0 0.0
        %915 = vmatprep.mubr.f32.mxu0 0.0
        %v916 = vand.u32 %v764, 4294901760
        %917 = vmatmul.mubr.f32.gmra.mrb[0].mxu0 %v916
        %v918 = vpop.f32.mrb[0].mxu0
        %v919 = vadd.f32 %v843, %v918
        %v920 = vpop.f32.mrb[0].mxu0
        %921 = vdwg.mxu0
        %922 = vmatprep.subr.mxu0 0.0
        %v923 = vand.u32 %v768, 4294901760
        %v924 = vsub.f32 %v768, %v923
        %925 = vmatpush1.msra.mxu0 %v924
        %926 = vmatprep.subr.mxu0 0.0
        %927 = vmatpush1.msra.mxu0 0.0
        %928 = vmatprep.subr.mxu0 0.0
        %929 = vmatpush1.msra.mxu0 0.0
        %930 = vmatprep.subr.mxu0 0.0
        %931 = vmatpush1.msra.mxu0 0.0
        %932 = vmatprep.subr.mxu0 0.0
        %933 = vmatpush1.msra.mxu0 0.0
        %934 = vmatprep.subr.mxu0 0.0
        %935 = vmatpush1.msra.mxu0 0.0
        %936 = vmatprep.subr.mxu0 0.0
        %937 = vmatpush1.msra.mxu0 0.0
        %938 = vmatprep.subr.mxu0 0.0
        %939 = vmatpush1.msra.mxu0 0.0
        %940 = vmatprep.subr.mxu0 0.0
        %941 = vmatpush1.msra.mxu0 0.0
        %942 = vmatprep.subr.mxu0 0.0
        %943 = vmatpush1.msra.mxu0 0.0
        %944 = vmatprep.subr.mxu0 0.0
        %945 = vmatpush1.msra.mxu0 0.0
        %946 = vmatprep.subr.mxu0 0.0
        %947 = vmatpush1.msra.mxu0 0.0
        %948 = vmatprep.subr.mxu0 0.0
        %949 = vmatpush1.msra.mxu0 0.0
        %950 = vmatprep.subr.mxu0 0.0
        %951 = vmatpush1.msra.mxu0 0.0
        %952 = vmatprep.subr.mxu0 0.0
        %953 = vmatpush1.msra.mxu0 0.0
        %954 = vmatprep.subr.mxu0 0.0
        %955 = vmatpush1.msra.mxu0 0.0
        %956 = vmatprep.subr.mxu0 0.0
        %957 = vmatpush1.msra.mxu0 0.0
        %958 = vmatprep.subr.mxu0 0.0
        %959 = vmatpush1.msra.mxu0 0.0
        %960 = vmatprep.subr.mxu0 0.0
        %961 = vmatpush1.msra.mxu0 0.0
        %962 = vmatprep.subr.mxu0 0.0
        %963 = vmatpush1.msra.mxu0 0.0
        %964 = vmatprep.subr.mxu0 0.0
        %965 = vmatpush1.msra.mxu0 0.0
        %966 = vmatprep.subr.mxu0 0.0
        %967 = vmatpush1.msra.mxu0 0.0
        %968 = vmatprep.subr.mxu0 0.0
        %969 = vmatpush1.msra.mxu0 0.0
        %970 = vmatprep.subr.mxu0 0.0
        %971 = vmatpush1.msra.mxu0 0.0
        %972 = vmatprep.subr.mxu0 0.0
        %973 = vmatpush1.msra.mxu0 0.0
        %974 = vmatprep.subr.mxu0 0.0
        %975 = vmatpush1.msra.mxu0 0.0
        %976 = vmatprep.subr.mxu0 0.0
        %977 = vmatpush1.msra.mxu0 0.0
        %978 = vmatprep.subr.mxu0 0.0
        %979 = vmatpush1.msra.mxu0 0.0
        %980 = vmatprep.subr.mxu0 0.0
        %981 = vmatpush1.msra.mxu0 0.0
        %982 = vmatprep.subr.mxu0 0.0
        %983 = vmatpush1.msra.mxu0 0.0
        %984 = vmatprep.subr.mxu0 0.0
        %985 = vmatpush1.msra.mxu0 0.0
        %986 = vmatprep.subr.mxu0 0.0
        %987 = vmatpush1.msra.mxu0 0.0
        %988 = vmatprep.mubr.f32.mxu0 0.0
        %v989 = vand.u32 %v764, 4294901760
        %v990 = vsub.f32 %v764, %v989
        %991 = vmatmul.mubr.f32.gmra.mrb[0].mxu0 %v990
        %v992 = vpop.f32.mrb[0].mxu0
        %v993 = vadd.f32 %v919, %v992
        %v994 = vpop.f32.mrb[0].mxu0
        %995 = vdwg.mxu0
        %996 = vmatprep.subr.mxu0 0.0
        %v997 = vand.u32 %v768, 4294901760
        %998 = vmatpush1.msra.mxu0 %v997
        %999 = vmatprep.subr.mxu0 0.0
        %1000 = vmatpush1.msra.mxu0 0.0
        %1001 = vmatprep.subr.mxu0 0.0
        %1002 = vmatpush1.msra.mxu0 0.0
        %1003 = vmatprep.subr.mxu0 0.0
        %1004 = vmatpush1.msra.mxu0 0.0
        %1005 = vmatprep.subr.mxu0 0.0
        %1006 = vmatpush1.msra.mxu0 0.0
        %1007 = vmatprep.subr.mxu0 0.0
        %1008 = vmatpush1.msra.mxu0 0.0
        %1009 = vmatprep.subr.mxu0 0.0
        %1010 = vmatpush1.msra.mxu0 0.0
        %1011 = vmatprep.subr.mxu0 0.0
        %1012 = vmatpush1.msra.mxu0 0.0
        %1013 = vmatprep.subr.mxu0 0.0
        %1014 = vmatpush1.msra.mxu0 0.0
        %1015 = vmatprep.subr.mxu0 0.0
        %1016 = vmatpush1.msra.mxu0 0.0
        %1017 = vmatprep.subr.mxu0 0.0
        %1018 = vmatpush1.msra.mxu0 0.0
        %1019 = vmatprep.subr.mxu0 0.0
        %1020 = vmatpush1.msra.mxu0 0.0
        %1021 = vmatprep.subr.mxu0 0.0
        %1022 = vmatpush1.msra.mxu0 0.0
        %1023 = vmatprep.subr.mxu0 0.0
        %1024 = vmatpush1.msra.mxu0 0.0
        %1025 = vmatprep.subr.mxu0 0.0
        %1026 = vmatpush1.msra.mxu0 0.0
        %1027 = vmatprep.subr.mxu0 0.0
        %1028 = vmatpush1.msra.mxu0 0.0
        %1029 = vmatprep.subr.mxu0 0.0
        %1030 = vmatpush1.msra.mxu0 0.0
        %1031 = vmatprep.subr.mxu0 0.0
        %1032 = vmatpush1.msra.mxu0 0.0
        %1033 = vmatprep.subr.mxu0 0.0
        %1034 = vmatpush1.msra.mxu0 0.0
        %1035 = vmatprep.subr.mxu0 0.0
        %1036 = vmatpush1.msra.mxu0 0.0
        %1037 = vmatprep.subr.mxu0 0.0
        %1038 = vmatpush1.msra.mxu0 0.0
        %1039 = vmatprep.subr.mxu0 0.0
        %1040 = vmatpush1.msra.mxu0 0.0
        %1041 = vmatprep.subr.mxu0 0.0
        %1042 = vmatpush1.msra.mxu0 0.0
        %1043 = vmatprep.subr.mxu0 0.0
        %1044 = vmatpush1.msra.mxu0 0.0
        %1045 = vmatprep.subr.mxu0 0.0
        %1046 = vmatpush1.msra.mxu0 0.0
        %1047 = vmatprep.subr.mxu0 0.0
        %1048 = vmatpush1.msra.mxu0 0.0
        %1049 = vmatprep.subr.mxu0 0.0
        %1050 = vmatpush1.msra.mxu0 0.0
        %1051 = vmatprep.subr.mxu0 0.0
        %1052 = vmatpush1.msra.mxu0 0.0
        %1053 = vmatprep.subr.mxu0 0.0
        %1054 = vmatpush1.msra.mxu0 0.0
        %1055 = vmatprep.subr.mxu0 0.0
        %1056 = vmatpush1.msra.mxu0 0.0
        %1057 = vmatprep.subr.mxu0 0.0
        %1058 = vmatpush1.msra.mxu0 0.0
        %1059 = vmatprep.subr.mxu0 0.0
        %1060 = vmatpush1.msra.mxu0 0.0
        %1061 = vmatprep.mubr.f32.mxu0 0.0
        %v1062 = vand.u32 %v764, 4294901760
        %v1063 = vsub.f32 %v764, %v1062
        %v1064 = vand.u32 %v1063, 4294901760
        %1065 = vmatmul.mubr.f32.gmra.mrb[0].mxu0 %v1064
        %v1066 = vpop.f32.mrb[0].mxu0
        %v1067 = vadd.f32 %v993, %v1066
        %v1068 = vpop.f32.mrb[0].mxu0
        %1069 = vdwg.mxu0
        %1070 = vmatprep.subr.mxu0 0.0
        %v1071 = vand.u32 %v768, 4294901760
        %v1072 = vsub.f32 %v768, %v1071
        %v1073 = vand.u32 %v1072, 4294901760
        %1074 = vmatpush1.msra.mxu0 %v1073
        %1075 = vmatprep.subr.mxu0 0.0
        %1076 = vmatpush1.msra.mxu0 0.0
        %1077 = vmatprep.subr.mxu0 0.0
        %1078 = vmatpush1.msra.mxu0 0.0
        %1079 = vmatprep.subr.mxu0 0.0
        %1080 = vmatpush1.msra.mxu0 0.0
        %1081 = vmatprep.subr.mxu0 0.0
        %1082 = vmatpush1.msra.mxu0 0.0
        %1083 = vmatprep.subr.mxu0 0.0
        %1084 = vmatpush1.msra.mxu0 0.0
        %1085 = vmatprep.subr.mxu0 0.0
        %1086 = vmatpush1.msra.mxu0 0.0
        %1087 = vmatprep.subr.mxu0 0.0
        %1088 = vmatpush1.msra.mxu0 0.0
        %1089 = vmatprep.subr.mxu0 0.0
        %1090 = vmatpush1.msra.mxu0 0.0
        %1091 = vmatprep.subr.mxu0 0.0
        %1092 = vmatpush1.msra.mxu0 0.0
        %1093 = vmatprep.subr.mxu0 0.0
        %1094 = vmatpush1.msra.mxu0 0.0
        %1095 = vmatprep.subr.mxu0 0.0
        %1096 = vmatpush1.msra.mxu0 0.0
        %1097 = vmatprep.subr.mxu0 0.0
        %1098 = vmatpush1.msra.mxu0 0.0
        %1099 = vmatprep.subr.mxu0 0.0
        %1100 = vmatpush1.msra.mxu0 0.0
        %1101 = vmatprep.subr.mxu0 0.0
        %1102 = vmatpush1.msra.mxu0 0.0
        %1103 = vmatprep.subr.mxu0 0.0
        %1104 = vmatpush1.msra.mxu0 0.0
        %1105 = vmatprep.subr.mxu0 0.0
        %1106 = vmatpush1.msra.mxu0 0.0
        %1107 = vmatprep.subr.mxu0 0.0
        %1108 = vmatpush1.msra.mxu0 0.0
        %1109 = vmatprep.subr.mxu0 0.0
        %1110 = vmatpush1.msra.mxu0 0.0
        %1111 = vmatprep.subr.mxu0 0.0
        %1112 = vmatpush1.msra.mxu0 0.0
        %1113 = vmatprep.subr.mxu0 0.0
        %1114 = vmatpush1.msra.mxu0 0.0
        %1115 = vmatprep.subr.mxu0 0.0
        %1116 = vmatpush1.msra.mxu0 0.0
        %1117 = vmatprep.subr.mxu0 0.0
        %1118 = vmatpush1.msra.mxu0 0.0
        %1119 = vmatprep.subr.mxu0 0.0
        %1120 = vmatpush1.msra.mxu0 0.0
        %1121 = vmatprep.subr.mxu0 0.0
        %1122 = vmatpush1.msra.mxu0 0.0
        %1123 = vmatprep.subr.mxu0 0.0
        %1124 = vmatpush1.msra.mxu0 0.0
        %1125 = vmatprep.subr.mxu0 0.0
        %1126 = vmatpush1.msra.mxu0 0.0
        %1127 = vmatprep.subr.mxu0 0.0
        %1128 = vmatpush1.msra.mxu0 0.0
        %1129 = vmatprep.subr.mxu0 0.0
        %1130 = vmatpush1.msra.mxu0 0.0
        %1131 = vmatprep.subr.mxu0 0.0
        %1132 = vmatpush1.msra.mxu0 0.0
        %1133 = vmatprep.subr.mxu0 0.0
        %1134 = vmatpush1.msra.mxu0 0.0
        %1135 = vmatprep.subr.mxu0 0.0
        %1136 = vmatpush1.msra.mxu0 0.0
        %1137 = vmatprep.mubr.f32.mxu0 0.0
        %v1138 = vand.u32 %v764, 4294901760
        %1139 = vmatmul.mubr.f32.gmra.mrb[0].mxu0 %v1138
        %v1140 = vpop.f32.mrb[0].mxu0
        %v1141 = vadd.f32 %v1067, %v1140
        %v1142 = vpop.f32.mrb[0].mxu0
        %1143 = vdwg.mxu0
        %1144 = vmatprep.subr.mxu0 0.0
        %v1145 = vand.u32 %v768, 4294901760
        %1146 = vmatpush1.msra.mxu0 %v1145
        %1147 = vmatprep.subr.mxu0 0.0
        %1148 = vmatpush1.msra.mxu0 0.0
        %1149 = vmatprep.subr.mxu0 0.0
        %1150 = vmatpush1.msra.mxu0 0.0
        %1151 = vmatprep.subr.mxu0 0.0
        %1152 = vmatpush1.msra.mxu0 0.0
        %1153 = vmatprep.subr.mxu0 0.0
        %1154 = vmatpush1.msra.mxu0 0.0
        %1155 = vmatprep.subr.mxu0 0.0
        %1156 = vmatpush1.msra.mxu0 0.0
        %1157 = vmatprep.subr.mxu0 0.0
        %1158 = vmatpush1.msra.mxu0 0.0
        %1159 = vmatprep.subr.mxu0 0.0
        %1160 = vmatpush1.msra.mxu0 0.0
        %1161 = vmatprep.subr.mxu0 0.0
        %1162 = vmatpush1.msra.mxu0 0.0
        %1163 = vmatprep.subr.mxu0 0.0
        %1164 = vmatpush1.msra.mxu0 0.0
        %1165 = vmatprep.subr.mxu0 0.0
        %1166 = vmatpush1.msra.mxu0 0.0
        %1167 = vmatprep.subr.mxu0 0.0
        %1168 = vmatpush1.msra.mxu0 0.0
        %1169 = vmatprep.subr.mxu0 0.0
        %1170 = vmatpush1.msra.mxu0 0.0
        %1171 = vmatprep.subr.mxu0 0.0
        %1172 = vmatpush1.msra.mxu0 0.0
        %1173 = vmatprep.subr.mxu0 0.0
        %1174 = vmatpush1.msra.mxu0 0.0
        %1175 = vmatprep.subr.mxu0 0.0
        %1176 = vmatpush1.msra.mxu0 0.0
        %1177 = vmatprep.subr.mxu0 0.0
        %1178 = vmatpush1.msra.mxu0 0.0
        %1179 = vmatprep.subr.mxu0 0.0
        %1180 = vmatpush1.msra.mxu0 0.0
        %1181 = vmatprep.subr.mxu0 0.0
        %1182 = vmatpush1.msra.mxu0 0.0
        %1183 = vmatprep.subr.mxu0 0.0
        %1184 = vmatpush1.msra.mxu0 0.0
        %1185 = vmatprep.subr.mxu0 0.0
        %1186 = vmatpush1.msra.mxu0 0.0
        %1187 = vmatprep.subr.mxu0 0.0
        %1188 = vmatpush1.msra.mxu0 0.0
        %1189 = vmatprep.subr.mxu0 0.0
        %1190 = vmatpush1.msra.mxu0 0.0
        %1191 = vmatprep.subr.mxu0 0.0
        %1192 = vmatpush1.msra.mxu0 0.0
        %1193 = vmatprep.subr.mxu0 0.0
        %1194 = vmatpush1.msra.mxu0 0.0
        %1195 = vmatprep.subr.mxu0 0.0
        %1196 = vmatpush1.msra.mxu0 0.0
        %1197 = vmatprep.subr.mxu0 0.0
        %1198 = vmatpush1.msra.mxu0 0.0
        %1199 = vmatprep.subr.mxu0 0.0
        %1200 = vmatpush1.msra.mxu0 0.0
        %1201 = vmatprep.subr.mxu0 0.0
        %1202 = vmatpush1.msra.mxu0 0.0
        %1203 = vmatprep.subr.mxu0 0.0
        %1204 = vmatpush1.msra.mxu0 0.0
        %1205 = vmatprep.subr.mxu0 0.0
        %1206 = vmatpush1.msra.mxu0 0.0
        %1207 = vmatprep.subr.mxu0 0.0
        %1208 = vmatpush1.msra.mxu0 0.0
        %1209 = vmatprep.mubr.f32.mxu0 0.0
        %v1210 = vand.u32 %v764, 4294901760
        %1211 = vmatmul.mubr.f32.gmra.mrb[0].mxu0 %v1210
        %v1212 = vpop.f32.mrb[0].mxu0
        %v1213 = vadd.f32 %v1141, %v1212
        %v1214 = vpop.f32.mrb[0].mxu0
        %1215 = vdwg.mxu0
        %v1216 = vld [vmem:[#allocation2] sm:$0x7f]
        %v1217 = vsub.f32 %v1216, %v1213
        %1218 = vst.msk [vmem:[%s256] sm:$0x7f] %vm747, %v1217
      $region40: #{tpu_custom_call.1} parent=31 // pred_fallthru
        _
      %p1219 = scmp.lt.s32.totalorder %s19, 1
      %s1220 = scalar_select %p1219, %s19, 1
      %p1221 = scmp.lt.s32.totalorder %s20, 0
      %s1222 = scalar_select %p1221, %s20, 0
      %s1223 = sadd.s32 %s1222, %s1220
      %s1224 = smul.addr %s1223, 8
      %s1225 = scalar_lea.vmem %s3, %s1224
      // Predicated region
      $region41: #{tpu_custom_call.1} parent=31 // pred_check
        %p1226 = pneg %p137
      $region42: #{tpu_custom_call.1} parent=31 // pred_check_branch
        %1228 = sbr.rel (%p1226) target = $region44
      $region43: #{tpu_custom_call.1} parent=31 // pred_region
        _
      $region44: #{tpu_custom_call.1} parent=31 // pred_fallthru
        _
    $region32: #{tpu_custom_call.1} parent=5 // pred_fallthru
      _
    %p1229 = scmp.le.s32.totalorder 2, %s9
    // Predicated region
    $region45: #{tpu_custom_call.1} parent=5 // pred_check
      %p1230 = pneg %p1229
    $region46: #{tpu_custom_call.1} parent=5 // pred_check_branch
      %1232 = sbr.rel (%p1230) target = $region48
    $region47: #{tpu_custom_call.1} parent=5 // pred_region
      %s1233 = ssub.s32 %s9, 2
      // Predicated region
      $region49: #{tpu_custom_call.1} parent=47 // pred_check
        %p1234 = pneg %p143
      $region50: #{tpu_custom_call.1} parent=47 // pred_check_branch
        %1236 = sbr.rel (%p1234) target = $region52
      $region51: #{tpu_custom_call.1} parent=47 // pred_region
        %p1237 = scmp.lt.s32.totalorder %s22, 1
        %s1238 = scalar_select %p1237, %s22, 1
        %p1239 = scmp.lt.s32.totalorder %s23, 0
        %s1240 = scalar_select %p1239, %s23, 0
        %s1241 = sadd.s32 %s1240, %s1238
        %s1242 = smul.addr %s1241, 8
        %s1243 = scalar_lea.vmem %s3, %s1242
      $region52: #{tpu_custom_call.1} parent=47 // pred_fallthru
        _
    $region48: #{tpu_custom_call.1} parent=5 // pred_fallthru
      _
  $region6: #{tpu_custom_call.1} parent=0 // loop_footer
    %s13 = sadd.s32 1, %s9
  $region7: #{tpu_custom_call.1} parent=0 // loop_footer_branch
    %8 = sbr.rel target = $region3
  $region8: #{tpu_custom_call.1} parent=0 // loop_exit
    _

</llo_original>
